<compile_context>
chip_gen: v5e
topology: v5e:2x2
jax: 0.10.0
libtpu: 0.0.40
codegen_flags: <defaults>
</compile_context>

<pallas_src>
import functools

import jax
import jax.numpy as jnp
import numpy as np
from jax.experimental import pallas as pl
from jax.experimental.pallas import tpu as pltpu


def _round_up(n, m):
    return ((n + m - 1) // m) * m


def _block_kernel(x_ref, w_in_ref, b_in_ref, w_conv_ref, eca_w_ref,
                  w_out_ref, b_out_ref, o_ref,
                  *, k_size, stride, l_out, res, eca_k):
    """One batch tile: x (Bt, L_pad, Cin_pad) -> out (Bt, l_out, Cout_pad)."""
    bt, l_pad, cin_pad = x_ref.shape
    e_pad = w_in_ref.shape[1]
    cout_pad = w_out_ref.shape[1]
    bf16 = jnp.bfloat16

    x = x_ref[...]                                             # (bt, l_pad, cin_pad) f32
    x2 = x.reshape(bt * l_pad, cin_pad).astype(bf16)

    # in_linear + ReLU (bf16 MXU inputs, f32 accumulation)
    h = jnp.dot(x2, w_in_ref[...], preferred_element_type=jnp.float32) + b_in_ref[...]
    h = jnp.maximum(h, 0.0)                                    # (bt*l_pad, e_pad) f32

    # conv1d (padding='valid', bias=False): k taps fused into one matmul against
    # w_conv of shape (k*e_pad, e_pad).  Rows past l_out per element are garbage
    # and are never stored / never enter the ECA pooling.
    hb = h.astype(bf16)
    if stride == 1:
        taps = [hb]
        for j in range(1, k_size):
            taps.append(jnp.concatenate(
                [hb[j:, :], jnp.zeros((j, e_pad), bf16)], axis=0))
        cat = jnp.concatenate(taps, axis=1) if k_size > 1 else taps[0]
        acc = jnp.dot(cat, w_conv_ref[...], preferred_element_type=jnp.float32)
    else:
        # TODO(synk): slower per-element fallback for stride > 1.
        h3 = hb.reshape(bt, l_pad, e_pad)
        rows = []
        for b in range(bt):
            hb_b = h3[b]
            sl = [jax.lax.slice(hb_b, (j, 0),
                                (j + (l_out - 1) * stride + 1, e_pad),
                                (stride, 1)) for j in range(k_size)]
            cat_b = jnp.concatenate(sl, axis=1) if k_size > 1 else sl[0]
            acc_b = jnp.dot(cat_b, w_conv_ref[...],
                            preferred_element_type=jnp.float32)
            acc_b = jnp.concatenate(
                [acc_b, jnp.zeros((l_pad - l_out, e_pad), jnp.float32)], axis=0)
            rows.append(acc_b)
        acc = jnp.concatenate(rows, axis=0)                    # (bt*l_pad, e_pad)

    y = jnp.maximum(acc, 0.0)                                  # ReLU, f32
    y3 = y.reshape(bt, l_pad, e_pad)

    # ECA: mean over the l_out valid rows, eca_k-tap channel conv via lane
    # shifts (exactly 'same' zero padding), sigmoid gate.
    pooled = jnp.sum(y3[:, :l_out, :], axis=1, keepdims=True) * (1.0 / l_out)
    pad = (eca_k - 1) // 2
    eca_w = eca_w_ref[...]                                     # (eca_k, 1, e_pad) f32
    att_pre = jnp.zeros_like(pooled)                           # (bt, 1, e_pad)
    for d in range(eca_k):
        off = d - pad
        if off == 0:
            sh = pooled
        elif off > 0:
            sh = jnp.concatenate(
                [pooled[:, :, off:], jnp.zeros((bt, 1, off), jnp.float32)], axis=2)
        else:
            sh = jnp.concatenate(
                [jnp.zeros((bt, 1, -off), jnp.float32), pooled[:, :, :off]], axis=2)
        att_pre = att_pre + sh * eca_w[d:d + 1]
    att = jax.nn.sigmoid(att_pre)                              # (bt, 1, e_pad)

    # gate + out_linear (eval-mode BatchNorm already folded into w_out/b_out)
    yg = (y3 * att).astype(bf16).reshape(bt * l_pad, e_pad)
    out = jnp.dot(yg, w_out_ref[...], preferred_element_type=jnp.float32) + b_out_ref[...]
    out3 = out.reshape(bt, l_pad, cout_pad)

    if res:  # residual (drop_path == identity in eval); requires cin==cout, l_out==L
        out3 = out3 + x

    o_ref[...] = out3[:, :l_out, :].astype(o_ref.dtype)


def conv1d_block(x, params, *, k_size, stride, eps=1e-5, batch_tile=8):
    B, L, c_in = x.shape
    E = params["w_in"].shape[1]
    c_out = params["w_out"].shape[1]
    eca_k = params["w_eca"].shape[0]
    l_out = (L - k_size) // stride + 1
    res = (c_in == c_out)          # decided on ORIGINAL (unpadded) channel counts
    if res and l_out != L:
        raise ValueError("residual path requires length-preserving conv")

    f32, bf16 = jnp.float32, jnp.bfloat16
    cin_p = _round_up(c_in, 128)
    e_p = _round_up(E, 128)
    cout_p = _round_up(c_out, 128)
    l_p = _round_up(L, 8)
    bt = max(1, min(batch_tile, B))
    b_p = _round_up(B, bt)

    # Lane/sublane-dense padding (zero padding is exactly neutral for this block).
    xp = jnp.zeros((b_p, l_p, cin_p), f32).at[:B, :L, :c_in].set(x.astype(f32))

    w_in = jnp.zeros((cin_p, e_p), f32).at[:c_in, :E].set(params["w_in"]).astype(bf16)
    b_in = jnp.zeros((1, e_p), f32).at[:, :E].set(params["b_in"])

    w_conv = jnp.zeros((k_size, e_p, e_p), f32).at[:, :E, :E].set(params["w_conv"])
    w_conv = w_conv.reshape(k_size * e_p, e_p).astype(bf16)    # fused-tap layout

    # Fold eval-mode BatchNorm1d into the out_linear weights/bias.
    scale = params["gamma"] * jax.lax.rsqrt(params["var"] + eps)      # (1, E)
    w_out_f = params["w_out"] * jnp.reshape(scale, (E, 1))
    b_out_f = params["b_out"] + (params["beta"] - params["mean"] * scale) @ params["w_out"]
    w_out = jnp.zeros((e_p, cout_p), f32).at[:E, :c_out].set(w_out_f).astype(bf16)
    b_out = jnp.zeros((1, cout_p), f32).at[:, :c_out].set(b_out_f)

    eca_w = jnp.broadcast_to(params["w_eca"].reshape(eca_k, 1, 1),
                             (eca_k, 1, e_p)).astype(f32)

    kernel = functools.partial(_block_kernel, k_size=k_size, stride=stride,
                               l_out=l_out, res=res, eca_k=eca_k)

    def full_spec(a):
        nd = a.ndim
        return pl.BlockSpec(a.shape, lambda g, _nd=nd: (0,) * _nd)

    weights = [w_in, b_in, w_conv, eca_w, w_out, b_out]

    flops = int(2 * b_p * l_p * (cin_p * e_p + k_size * e_p * e_p + e_p * cout_p))
    bytes_accessed = int(4 * (xp.size + b_p * l_out * cout_p)
                         + sum((2 if w.dtype == bf16 else 4) * w.size for w in weights))
    cost = pl.CostEstimate(flops=flops, transcendentals=int(b_p * e_p),
                           bytes_accessed=bytes_accessed)

    out_p = pl.pallas_call(
        kernel,
        out_shape=jax.ShapeDtypeStruct((b_p, l_out, cout_p), jnp.float32),
        grid=(b_p // bt,),
        in_specs=[pl.BlockSpec((bt, l_p, cin_p), lambda g: (g, 0, 0))]
                 + [full_spec(w) for w in weights],
        out_specs=pl.BlockSpec((bt, l_out, cout_p), lambda g: (g, 0, 0)),
        compiler_params=pltpu.CompilerParams(
            dimension_semantics=("parallel",),
            vmem_limit_bytes=48 * 1024 * 1024),
        cost_estimate=cost,
    )(xp, *weights)

    return out_p[:B, :, :c_out]


def init_params(key, in_channels, out_channels, expand_ratio, k_size, eca_k=3):
    E = out_channels * expand_ratio
    ks = jax.random.split(key, 10)
    w_in = 0.1 * jax.random.normal(ks[0], (in_channels, E), jnp.float32)
    b_in = 0.1 * jax.random.normal(ks[1], (1, E), jnp.float32)
    # PyTorch Conv1d weight is (E_out, E_in, k); store per-tap as (k, E_in, E_out)
    w_conv_pt = 0.1 * jax.random.normal(ks[2], (E, E, k_size), jnp.float32)
    w_conv = jnp.transpose(w_conv_pt, (2, 1, 0))
    # ECA: 1D conv across channels (kernel eca_k, same padding, no bias)
    w_eca = 0.5 * jax.random.normal(ks[3], (eca_k,), jnp.float32)
    gamma = 1.0 + 0.1 * jax.random.normal(ks[4], (1, E), jnp.float32)
    beta = 0.1 * jax.random.normal(ks[5], (1, E), jnp.float32)
    mean = 0.1 * jax.random.normal(ks[6], (1, E), jnp.float32)
    var = jnp.abs(jax.random.normal(ks[7], (1, E), jnp.float32)) + 0.5
    w_out = 0.1 * jax.random.normal(ks[8], (E, out_channels), jnp.float32)
    b_out = 0.1 * jax.random.normal(ks[9], (1, out_channels), jnp.float32)
    return dict(w_in=w_in, b_in=b_in, w_conv=w_conv, w_eca=w_eca,
                gamma=gamma, beta=beta, mean=mean, var=var,
                w_out=w_out, b_out=b_out)


def reference(x, p, *, k_size, stride, eps=1e-5):
    """Pure-JAX f32 reference (un-folded BN, dense banded ECA matrix)."""
    c_in = x.shape[-1]
    c_out = p["w_out"].shape[1]
    E = p["w_in"].shape[1]
    h = jax.nn.relu(x @ p["w_in"] + p["b_in"])
    y = jax.lax.conv_general_dilated(h, p["w_conv"], window_strides=(stride,),
                                     padding="VALID",
                                     dimension_numbers=("NWC", "WIO", "NWC"))
    y = jax.nn.relu(y)
    pooled = y.mean(axis=1, keepdims=True)
    eca_k = p["w_eca"].shape[0]
    pad = (eca_k - 1) // 2
    eca_mat = jnp.zeros((E, E), jnp.float32)
    for d in range(eca_k):
        eca_mat = eca_mat + jnp.eye(E, k=-(d - pad), dtype=jnp.float32) * p["w_eca"][d]
    att = jax.nn.sigmoid(pooled @ eca_mat)
    y = y * att
    scale = p["gamma"] * jax.lax.rsqrt(p["var"] + eps)
    y = (y - p["mean"]) * scale + p["beta"]
    out = y @ p["w_out"] + p["b_out"]
    if c_in == c_out:
        out = out + x
    return out


if __name__ == "__main__":
    key = jax.random.PRNGKey(0)
    kx, kp, kx2, kp2 = jax.random.split(key, 4)

    # Config 1: expand/project block (C_IN != C_OUT -> no residual)
    B, L, C_IN, C_OUT = 2, 16, 4, 8
    EXPAND, K_SIZE, STRIDE = 2, 3, 1
    x = jax.random.normal(kx, (B, L, C_IN), jnp.float32)
    params = init_params(kp, C_IN, C_OUT, EXPAND, K_SIZE)
    out = jax.block_until_ready(conv1d_block(x, params, k_size=K_SIZE, stride=STRIDE))
    ref = jax.block_until_ready(reference(x, params, k_size=K_SIZE, stride=STRIDE))
    np.testing.assert_allclose(np.asarray(out), np.asarray(ref), atol=2e-2, rtol=2e-2)

    # Config 2: residual block (C_IN == C_OUT, k_size=1 keeps length)
    B2, L2, C2 = 2, 16, 8
    x2 = jax.random.normal(kx2, (B2, L2, C2), jnp.float32)
    params2 = init_params(kp2, C2, C2, 2, 1)
    out2 = jax.block_until_ready(conv1d_block(x2, params2, k_size=1, stride=1))
    ref2 = jax.block_until_ready(reference(x2, params2, k_size=1, stride=1))
    np.testing.assert_allclose(np.asarray(out2), np.asarray(ref2), atol=2e-2, rtol=2e-2)

    print("KERNEL_OK")
</pallas_src>

<mosaic_0001>
module attributes {stable_mosaic.version = 11 : i64} {
  func.func @_block_kernel(%arg0: i32, %arg1: memref<2x16x128xf32, #tpu.memory_space<vmem>>, %arg2: memref<128x128xbf16, #tpu.memory_space<vmem>>, %arg3: memref<1x128xf32, #tpu.memory_space<vmem>>, %arg4: memref<384x128xbf16, #tpu.memory_space<vmem>>, %arg5: memref<3x1x128xf32, #tpu.memory_space<vmem>>, %arg6: memref<128x128xbf16, #tpu.memory_space<vmem>>, %arg7: memref<1x128xf32, #tpu.memory_space<vmem>>, %arg8: memref<2x14x128xf32, #tpu.memory_space<vmem>>) attributes {dimension_semantics = [#tpu.dimension_semantics<parallel>], iteration_bounds = array<i64: 1>, scalar_prefetch = 0 : i64, scratch_operands = 0 : i64, tpu.core_type = #tpu.core_type<tc>, window_params = [{transform_indices = @transform_0, window_bounds = array<i64: 2, 16, 128>}, {pipeline_mode = #tpu.pipeline_mode<synchronous>, transform_indices = @transform_1, window_bounds = array<i64: 128, 128>}, {pipeline_mode = #tpu.pipeline_mode<synchronous>, transform_indices = @transform_2, window_bounds = array<i64: 1, 128>}, {pipeline_mode = #tpu.pipeline_mode<synchronous>, transform_indices = @transform_3, window_bounds = array<i64: 384, 128>}, {pipeline_mode = #tpu.pipeline_mode<synchronous>, transform_indices = @transform_4, window_bounds = array<i64: 3, 1, 128>}, {pipeline_mode = #tpu.pipeline_mode<synchronous>, transform_indices = @transform_5, window_bounds = array<i64: 128, 128>}, {pipeline_mode = #tpu.pipeline_mode<synchronous>, transform_indices = @transform_6, window_bounds = array<i64: 1, 128>}, {transform_indices = @transform_7, window_bounds = array<i64: 2, 14, 128>}]} {
    %c0 = arith.constant 0 : index
    %c0_0 = arith.constant 0 : index
    %c0_1 = arith.constant 0 : index
    %0 = vector.load %arg1[%c0, %c0_0, %c0_1] : memref<2x16x128xf32, #tpu.memory_space<vmem>>, vector<2x16x128xf32>
    %1 = vector.shape_cast %0 : vector<2x16x128xf32> to vector<32x128xf32>
    %2 = arith.truncf %1 : vector<32x128xf32> to vector<32x128xbf16>
    %c0_2 = arith.constant 0 : index
    %c0_3 = arith.constant 0 : index
    %3 = vector.load %arg2[%c0_2, %c0_3] : memref<128x128xbf16, #tpu.memory_space<vmem>>, vector<128x128xbf16>
    %cst = arith.constant dense<0.000000e+00> : vector<32x128xf32>
    %4 = tpu.matmul %2, %3, %cst {dimension_numbers = #tpu.dot_dimension_numbers<[1], [0], [0], [1], [0, 0, 1, 1], [], []>} : vector<32x128xbf16>, vector<128x128xbf16>, vector<32x128xf32> -> vector<32x128xf32>
    %c0_4 = arith.constant 0 : index
    %c0_5 = arith.constant 0 : index
    %5 = vector.load %arg3[%c0_4, %c0_5] : memref<1x128xf32, #tpu.memory_space<vmem>>, vector<1x128xf32>
    %6 = vector.broadcast %5 : vector<1x128xf32> to vector<32x128xf32>
    %7 = arith.addf %4, %6 : vector<32x128xf32>
    %cst_6 = arith.constant 0.000000e+00 : f32
    %8 = vector.broadcast %cst_6 : f32 to vector<32x128xf32>
    %9 = arith.maximumf %7, %8 : vector<32x128xf32>
    %10 = arith.truncf %9 : vector<32x128xf32> to vector<32x128xbf16>
    %11 = vector.extract_strided_slice %10 {offsets = [1, 0], sizes = [31, 128], strides = [1, 1]} : vector<32x128xbf16> to vector<31x128xbf16>
    %cst_7 = arith.constant 0.000000e+00 : bf16
    %12 = vector.broadcast %cst_7 : bf16 to vector<1x128xbf16>
    %13 = tpu.concatenate %11, %12 in 0 : vector<31x128xbf16>, vector<1x128xbf16> -> vector<32x128xbf16>
    %14 = vector.extract_strided_slice %10 {offsets = [2, 0], sizes = [30, 128], strides = [1, 1]} : vector<32x128xbf16> to vector<30x128xbf16>
    %cst_8 = arith.constant 0.000000e+00 : bf16
    %15 = vector.broadcast %cst_8 : bf16 to vector<2x128xbf16>
    %16 = tpu.concatenate %14, %15 in 0 : vector<30x128xbf16>, vector<2x128xbf16> -> vector<32x128xbf16>
    %17 = tpu.concatenate %10, %13, %16 in 1 : vector<32x128xbf16>, vector<32x128xbf16>, vector<32x128xbf16> -> vector<32x384xbf16>
    %c0_9 = arith.constant 0 : index
    %c0_10 = arith.constant 0 : index
    %18 = vector.load %arg4[%c0_9, %c0_10] : memref<384x128xbf16, #tpu.memory_space<vmem>>, vector<384x128xbf16>
    %cst_11 = arith.constant dense<0.000000e+00> : vector<32x128xf32>
    %19 = tpu.matmul %17, %18, %cst_11 {dimension_numbers = #tpu.dot_dimension_numbers<[1], [0], [0], [1], [0, 0, 1, 1], [], []>} : vector<32x384xbf16>, vector<384x128xbf16>, vector<32x128xf32> -> vector<32x128xf32>
    %cst_12 = arith.constant 0.000000e+00 : f32
    %20 = vector.broadcast %cst_12 : f32 to vector<32x128xf32>
    %21 = arith.maximumf %19, %20 : vector<32x128xf32>
    %22 = vector.shape_cast %21 : vector<32x128xf32> to vector<2x16x128xf32>
    %23 = vector.extract_strided_slice %22 {offsets = [0, 0, 0], sizes = [2, 14, 128], strides = [1, 1, 1]} : vector<2x16x128xf32> to vector<2x14x128xf32>
    %cst_13 = arith.constant dense<0.000000e+00> : vector<2x128xf32>
    %24 = vector.multi_reduction <add>, %23, %cst_13 [1] : vector<2x14x128xf32> to vector<2x128xf32>
    %25 = vector.shape_cast %24 : vector<2x128xf32> to vector<2x1x128xf32>
    %cst_14 = arith.constant 0.0714285746 : f32
    %26 = vector.broadcast %cst_14 : f32 to vector<2x1x128xf32>
    %27 = arith.mulf %25, %26 : vector<2x1x128xf32>
    %c0_15 = arith.constant 0 : index
    %c0_16 = arith.constant 0 : index
    %c0_17 = arith.constant 0 : index
    %28 = vector.load %arg5[%c0_15, %c0_16, %c0_17] : memref<3x1x128xf32, #tpu.memory_space<vmem>>, vector<3x1x128xf32>
    %cst_18 = arith.constant 0.000000e+00 : f32
    %29 = vector.broadcast %cst_18 : f32 to vector<2x1x128xf32>
    %cst_19 = arith.constant 0.000000e+00 : f32
    %30 = vector.broadcast %cst_19 : f32 to vector<2x1x1xf32>
    %31 = vector.extract_strided_slice %27 {offsets = [0, 0, 0], sizes = [2, 1, 127], strides = [1, 1, 1]} : vector<2x1x128xf32> to vector<2x1x127xf32>
    %32 = tpu.concatenate %30, %31 in 2 : vector<2x1x1xf32>, vector<2x1x127xf32> -> vector<2x1x128xf32>
    %33 = vector.extract_strided_slice %28 {offsets = [0, 0, 0], sizes = [1, 1, 128], strides = [1, 1, 1]} : vector<3x1x128xf32> to vector<1x1x128xf32>
    %34 = vector.broadcast %33 : vector<1x1x128xf32> to vector<2x1x128xf32>
    %35 = arith.mulf %32, %34 : vector<2x1x128xf32>
    %36 = arith.addf %29, %35 : vector<2x1x128xf32>
    %37 = vector.extract_strided_slice %28 {offsets = [1, 0, 0], sizes = [1, 1, 128], strides = [1, 1, 1]} : vector<3x1x128xf32> to vector<1x1x128xf32>
    %38 = vector.broadcast %37 : vector<1x1x128xf32> to vector<2x1x128xf32>
    %39 = arith.mulf %27, %38 : vector<2x1x128xf32>
    %40 = arith.addf %36, %39 : vector<2x1x128xf32>
    %41 = vector.extract_strided_slice %27 {offsets = [0, 0, 1], sizes = [2, 1, 127], strides = [1, 1, 1]} : vector<2x1x128xf32> to vector<2x1x127xf32>
    %cst_20 = arith.constant 0.000000e+00 : f32
    %42 = vector.broadcast %cst_20 : f32 to vector<2x1x1xf32>
    %43 = tpu.concatenate %41, %42 in 2 : vector<2x1x127xf32>, vector<2x1x1xf32> -> vector<2x1x128xf32>
    %44 = vector.extract_strided_slice %28 {offsets = [2, 0, 0], sizes = [1, 1, 128], strides = [1, 1, 1]} : vector<3x1x128xf32> to vector<1x1x128xf32>
    %45 = vector.broadcast %44 : vector<1x1x128xf32> to vector<2x1x128xf32>
    %46 = arith.mulf %43, %45 : vector<2x1x128xf32>
    %47 = arith.addf %40, %46 : vector<2x1x128xf32>
    %48 = arith.negf %47 : vector<2x1x128xf32>
    %49 = math.exp %48 : vector<2x1x128xf32>
    %cst_21 = arith.constant 1.000000e+00 : f32
    %50 = vector.broadcast %cst_21 : f32 to vector<2x1x128xf32>
    %51 = arith.addf %50, %49 : vector<2x1x128xf32>
    %52 = arith.divf %50, %51 : vector<2x1x128xf32>
    %53 = vector.broadcast %52 : vector<2x1x128xf32> to vector<2x16x128xf32>
    %54 = arith.mulf %22, %53 : vector<2x16x128xf32>
    %55 = arith.truncf %54 : vector<2x16x128xf32> to vector<2x16x128xbf16>
    %56 = vector.shape_cast %55 : vector<2x16x128xbf16> to vector<32x128xbf16>
    %c0_22 = arith.constant 0 : index
    %c0_23 = arith.constant 0 : index
    %57 = vector.load %arg6[%c0_22, %c0_23] : memref<128x128xbf16, #tpu.memory_space<vmem>>, vector<128x128xbf16>
    %cst_24 = arith.constant dense<0.000000e+00> : vector<32x128xf32>
    %58 = tpu.matmul %56, %57, %cst_24 {dimension_numbers = #tpu.dot_dimension_numbers<[1], [0], [0], [1], [0, 0, 1, 1], [], []>} : vector<32x128xbf16>, vector<128x128xbf16>, vector<32x128xf32> -> vector<32x128xf32>
    %c0_25 = arith.constant 0 : index
    %c0_26 = arith.constant 0 : index
    %59 = vector.load %arg7[%c0_25, %c0_26] : memref<1x128xf32, #tpu.memory_space<vmem>>, vector<1x128xf32>
    %60 = vector.broadcast %59 : vector<1x128xf32> to vector<32x128xf32>
    %61 = arith.addf %58, %60 : vector<32x128xf32>
    %62 = vector.shape_cast %61 : vector<32x128xf32> to vector<2x16x128xf32>
    %63 = vector.extract_strided_slice %62 {offsets = [0, 0, 0], sizes = [2, 14, 128], strides = [1, 1, 1]} : vector<2x16x128xf32> to vector<2x14x128xf32>
    %c0_27 = arith.constant 0 : index
    %c0_28 = arith.constant 0 : index
    %c0_29 = arith.constant 0 : index
    %64 = vector.load %arg8[%c0_27, %c0_28, %c0_29] : memref<2x14x128xf32, #tpu.memory_space<vmem>>, vector<2x14x128xf32>
    tpu.vector_store %arg8[%c0_27, %c0_28, %c0_29], %63 {strides = array<i32>} : memref<2x14x128xf32, #tpu.memory_space<vmem>>, vector<2x14x128xf32>,
    return
  }
  func.func @transform_0(%arg0: i32) -> (i32, i32, i32) {
    %c0_i32 = arith.constant 0 : i32
    %c0_i32_0 = arith.constant 0 : i32
    %c0_i32_1 = arith.constant 0 : i32
    return %arg0, %c0_i32, %c0_i32_0 : i32, i32, i32
  }
  func.func @transform_1(%arg0: i32) -> (i32, i32) {
    %c0_i32 = arith.constant 0 : i32
    %c0_i32_0 = arith.constant 0 : i32
    %c0_i32_1 = arith.constant 0 : i32
    return %c0_i32, %c0_i32_0 : i32, i32
  }
  func.func @transform_2(%arg0: i32) -> (i32, i32) {
    %c0_i32 = arith.constant 0 : i32
    %c0_i32_0 = arith.constant 0 : i32
    %c0_i32_1 = arith.constant 0 : i32
    return %c0_i32, %c0_i32_0 : i32, i32
  }
  func.func @transform_3(%arg0: i32) -> (i32, i32) {
    %c0_i32 = arith.constant 0 : i32
    %c0_i32_0 = arith.constant 0 : i32
    %c0_i32_1 = arith.constant 0 : i32
    return %c0_i32, %c0_i32_0 : i32, i32
  }
  func.func @transform_4(%arg0: i32) -> (i32, i32, i32) {
    %c0_i32 = arith.constant 0 : i32
    %c0_i32_0 = arith.constant 0 : i32
    %c0_i32_1 = arith.constant 0 : i32
    %c0_i32_2 = arith.constant 0 : i32
    return %c0_i32, %c0_i32_0, %c0_i32_1 : i32, i32, i32
  }
  func.func @transform_5(%arg0: i32) -> (i32, i32) {
    %c0_i32 = arith.constant 0 : i32
    %c0_i32_0 = arith.constant 0 : i32
    %c0_i32_1 = arith.constant 0 : i32
    return %c0_i32, %c0_i32_0 : i32, i32
  }
  func.func @transform_6(%arg0: i32) -> (i32, i32) {
    %c0_i32 = arith.constant 0 : i32
    %c0_i32_0 = arith.constant 0 : i32
    %c0_i32_1 = arith.constant 0 : i32
    return %c0_i32, %c0_i32_0 : i32, i32
  }
  func.func @transform_7(%arg0: i32) -> (i32, i32, i32) {
    %c0_i32 = arith.constant 0 : i32
    %c0_i32_0 = arith.constant 0 : i32
    %c0_i32_1 = arith.constant 0 : i32
    return %arg0, %c0_i32, %c0_i32_0 : i32, i32, i32
  }
}

</mosaic_0001>

<llo_original>
// kernel: tpu_custom_call.1
$region0: #{tpu_custom_call.1}
  #allocation0 [shape = 'u32[]', space=smem, size = 0x4, offset = 0x4, fixed_abs, tag = 'smem constant byte address 0x4 - core index']
  #allocation1 [shape = 'u32[72,128]{1,0:T(1,128)}', space=vmem, size = 0x9000, scoped, tag = 'internal scratch']
  %s0 = inlined_call_operand.hbm [shape: f32[2,16,128], index: 0, kind: input, shape index: {}]
  %s1 = inlined_call_operand.hbm [shape: bf16[128,128], index: 1, kind: input, shape index: {}]
  %s2 = inlined_call_operand.hbm [shape: f32[1,128], index: 2, kind: input, shape index: {}]
  %s3 = inlined_call_operand.hbm [shape: bf16[384,128], index: 3, kind: input, shape index: {}]
  %s4 = inlined_call_operand.vmem [shape: f32[3,1,128], index: 4, kind: input, shape index: {}]
  %s5 = inlined_call_operand.hbm [shape: bf16[128,128], index: 5, kind: input, shape index: {}]
  %s6 = inlined_call_operand.vmem [shape: f32[1,128], index: 6, kind: input, shape index: {}]
  %s7 = inlined_call_operand.vmem [shape: f32[2,14,128], index: 7, kind: output, shape index: {}]
  %s8 = sld [smem:[#allocation0]]
  $region58: #{tpu_custom_call.1} parent=0
    _
  %s10 = ssub.s32 1, %s8
  %s11 = scalar_select 0, %s10, %s8
  $region1: #{tpu_custom_call.1} parent=0
    #allocation2 [shape = 'u8[16384]{0}', space=vmem, size = 0x4000, scoped, tag = 'input window, operand 0, single buffered']
    #allocation3 [shape = 's32[1]{0}', space=sflag, size = 0x4, scoped, tag = 'scoped memory for tpu_custom_call.1']
    #allocation4 [shape = 'u8[32768]{0}', space=vmem, size = 0x8000, scoped, tag = 'input window, operand 1, single buffered']
    #allocation5 [shape = 's32[1]{0}', space=sflag, size = 0x4, scoped, tag = 'scoped memory for tpu_custom_call.1']
    #allocation6 [shape = 'u8[512]{0}', space=vmem, size = 0x400, scoped, tag = 'input window, operand 2, single buffered']
    #allocation7 [shape = 'u8[98304]{0}', space=vmem, size = 0x18000, scoped, tag = 'input window, operand 3, single buffered']
    #allocation8 [shape = 's32[1]{0}', space=sflag, size = 0x4, scoped, tag = 'scoped memory for tpu_custom_call.1']
    #allocation9 [shape = 'u8[32768]{0}', space=vmem, size = 0x8000, scoped, tag = 'input window, operand 5, single buffered']
    %12 = vsyncpa [#allocation3], 0
    %13 = vsyncpa [#allocation5], 0
    %14 = vsyncpa [#allocation8], 0
    // Predicated region
    $region2: #{tpu_custom_call.1} parent=1 // pred_check
      _
    $region3: #{tpu_custom_call.1} parent=1 // pred_check_branch
      %16 = sbr.rel (0) target = $region5
    $region4: #{tpu_custom_call.1} parent=1 // pred_region
      %18 = vsyncadd [#allocation3], 0
      %s19 = sshll.u32 %s0, 4
      %s20 = int_to_ptr.hbm [resolvable:$true] %s19
      %s21 = sshll.u32 [#allocation2], 4
      %s22 = int_to_ptr.vmem [resolvable:$true] %s21
      %27 = dma.hbm_to_vmem [thread:$0]  %s20, 512, %s22, [#allocation3], 128, 128, 8
    $region5: #{tpu_custom_call.1} parent=1 // pred_fallthru
      _
    // Predicated region
    $region6: #{tpu_custom_call.1} parent=1 // pred_check
      _
    $region7: #{tpu_custom_call.1} parent=1 // pred_check_branch
      %29 = sbr.rel (0) target = $region9
    $region8: #{tpu_custom_call.1} parent=1 // pred_region
      %31 = vsyncadd [#allocation5], 0
      %s32 = sshll.u32 %s1, 4
      %s33 = int_to_ptr.hbm [resolvable:$true] %s32
      %s34 = sshll.u32 [#allocation4], 4
      %s35 = int_to_ptr.vmem [resolvable:$true] %s34
      %40 = dma.hbm_to_vmem [thread:$0]  %s33, 1024, %s35, [#allocation5], 64, 64, 4
    $region9: #{tpu_custom_call.1} parent=1 // pred_fallthru
      _
    // Predicated region
    $region10: #{tpu_custom_call.1} parent=1 // pred_check
      _
    $region11: #{tpu_custom_call.1} parent=1 // pred_check_branch
      %42 = sbr.rel (0) target = $region13
    $region12: #{tpu_custom_call.1} parent=1 // pred_region
      %44 = vsyncadd [#allocation5], 0
      %s46 = sshll.u32 %s2, 4
      %s47 = int_to_ptr.hbm [resolvable:$true] %s46
      %s48 = sshll.u32 [#allocation6], 4
      %s49 = int_to_ptr.vmem [resolvable:$true] %s48
      %51 = dma.hbm_to_vmem [thread:$0]  %s47, 16, %s49, [#allocation5]
    $region13: #{tpu_custom_call.1} parent=1 // pred_fallthru
      _
    // Predicated region
    $region14: #{tpu_custom_call.1} parent=1 // pred_check
      _
    $region15: #{tpu_custom_call.1} parent=1 // pred_check_branch
      %53 = sbr.rel (0) target = $region17
    $region16: #{tpu_custom_call.1} parent=1 // pred_region
      %55 = vsyncadd [#allocation8], 0
      %s56 = sshll.u32 %s3, 4
      %s57 = int_to_ptr.hbm [resolvable:$true] %s56
      %s58 = sshll.u32 [#allocation7], 4
      %s59 = int_to_ptr.vmem [resolvable:$true] %s58
      %64 = dma.hbm_to_vmem [thread:$0]  %s57, 3072, %s59, [#allocation8], 64, 64, 4
    $region17: #{tpu_custom_call.1} parent=1 // pred_fallthru
      _
    // Predicated region
    $region18: #{tpu_custom_call.1} parent=1 // pred_check
      _
    $region19: #{tpu_custom_call.1} parent=1 // pred_check_branch
      %66 = sbr.rel (0) target = $region21
    $region20: #{tpu_custom_call.1} parent=1 // pred_region
      _
    $region21: #{tpu_custom_call.1} parent=1 // pred_fallthru
      _
    // Predicated region
    $region22: #{tpu_custom_call.1} parent=1 // pred_check
      _
    $region23: #{tpu_custom_call.1} parent=1 // pred_check_branch
      %68 = sbr.rel (0) target = $region25
    $region24: #{tpu_custom_call.1} parent=1 // pred_region
      %70 = vsyncadd [#allocation8], 0
      %s71 = sshll.u32 %s5, 4
      %s72 = int_to_ptr.hbm [resolvable:$true] %s71
      %s73 = sshll.u32 [#allocation9], 4
      %s74 = int_to_ptr.vmem [resolvable:$true] %s73
      %79 = dma.hbm_to_vmem [thread:$0]  %s72, 1024, %s74, [#allocation8], 64, 64, 4
    $region25: #{tpu_custom_call.1} parent=1 // pred_fallthru
      _
    // Predicated region
    $region26: #{tpu_custom_call.1} parent=1 // pred_check
      _
    $region27: #{tpu_custom_call.1} parent=1 // pred_check_branch
      %81 = sbr.rel (0) target = $region29
    $region28: #{tpu_custom_call.1} parent=1 // pred_region
      _
    $region29: #{tpu_custom_call.1} parent=1 // pred_fallthru
      _
    // Predicated region
    $region30: #{tpu_custom_call.1} parent=1 // pred_check
      _
    $region31: #{tpu_custom_call.1} parent=1 // pred_check_branch
      %83 = sbr.rel (0) target = $region33
    $region32: #{tpu_custom_call.1} parent=1 // pred_region
      %85 = dma.done [#allocation3], 512
    $region33: #{tpu_custom_call.1} parent=1 // pred_fallthru
      _
    // Predicated region
    $region34: #{tpu_custom_call.1} parent=1 // pred_check
      _
    $region35: #{tpu_custom_call.1} parent=1 // pred_check_branch
      %87 = sbr.rel (0) target = $region37
    $region36: #{tpu_custom_call.1} parent=1 // pred_region
      %89 = dma.done [#allocation5], 1024
    $region37: #{tpu_custom_call.1} parent=1 // pred_fallthru
      _
    // Predicated region
    $region38: #{tpu_custom_call.1} parent=1 // pred_check
      _
    $region39: #{tpu_custom_call.1} parent=1 // pred_check_branch
      %91 = sbr.rel (0) target = $region41
    $region40: #{tpu_custom_call.1} parent=1 // pred_region
      %93 = dma.done [#allocation5], 16
    $region41: #{tpu_custom_call.1} parent=1 // pred_fallthru
      _
    // Predicated region
    $region42: #{tpu_custom_call.1} parent=1 // pred_check
      _
    $region43: #{tpu_custom_call.1} parent=1 // pred_check_branch
      %95 = sbr.rel (0) target = $region45
    $region44: #{tpu_custom_call.1} parent=1 // pred_region
      %97 = dma.done [#allocation8], 3072
    $region45: #{tpu_custom_call.1} parent=1 // pred_fallthru
      _
    // Predicated region
    $region46: #{tpu_custom_call.1} parent=1 // pred_check
      _
    $region47: #{tpu_custom_call.1} parent=1 // pred_check_branch
      %99 = sbr.rel (0) target = $region49
    $region48: #{tpu_custom_call.1} parent=1 // pred_region
      %101 = dma.done [#allocation8], 1024
    $region49: #{tpu_custom_call.1} parent=1 // pred_fallthru
      _
    %v103 = vld [vmem:[#allocation2] sm:$0xff]
    %v104 = vld [vmem:[#allocation2 + $0x8] sm:$0xff]
    %v105 = vld [vmem:[#allocation2 + $0x10] sm:$0xff]
    %v106 = vld [vmem:[#allocation2 + $0x18] sm:$0xff]
    %v107 = vpack.c.bf16 %v104, %v103
    %v108 = vpack.c.bf16 %v106, %v105
    %v109 = vld [vmem:[#allocation4] sm:$0xf]
    %v110 = vld [vmem:[#allocation4 + $0x4] sm:$0xf]
    %v111 = vld [vmem:[#allocation4 + $0x8] sm:$0xf]
    %v112 = vld [vmem:[#allocation4 + $0xc] sm:$0xf]
    %v113 = vld [vmem:[#allocation4 + $0x10] sm:$0xf]
    %v114 = vld [vmem:[#allocation4 + $0x14] sm:$0xf]
    %v115 = vld [vmem:[#allocation4 + $0x18] sm:$0xf]
    %v116 = vld [vmem:[#allocation4 + $0x1c] sm:$0xf]
    %v117 = vld [vmem:[#allocation4 + $0x20] sm:$0xf]
    %v118 = vld [vmem:[#allocation4 + $0x24] sm:$0xf]
    %v119 = vld [vmem:[#allocation4 + $0x28] sm:$0xf]
    %v120 = vld [vmem:[#allocation4 + $0x2c] sm:$0xf]
    %v121 = vld [vmem:[#allocation4 + $0x30] sm:$0xf]
    %v122 = vld [vmem:[#allocation4 + $0x34] sm:$0xf]
    %v123 = vld [vmem:[#allocation4 + $0x38] sm:$0xf]
    %v124 = vld [vmem:[#allocation4 + $0x3c] sm:$0xf]
    %v125 = vld [vmem:[#allocation6] sm:$0x1]
    %v127 = vperm.slane %v125, 0
    %v145 = vunpack.c.l.b16 %v109
    %v146 = vunpack.c.l.b16 %v110
    %v147 = vunpack.c.l.b16 %v111
    %v148 = vunpack.c.l.b16 %v112
    %v149 = vunpack.c.l.b16 %v113
    %v150 = vunpack.c.l.b16 %v114
    %v151 = vunpack.c.l.b16 %v115
    %v152 = vunpack.c.l.b16 %v116
    %v153 = vunpack.c.l.b16 %v117
    %v154 = vunpack.c.l.b16 %v118
    %v155 = vunpack.c.l.b16 %v119
    %v156 = vunpack.c.l.b16 %v120
    %v157 = vunpack.c.l.b16 %v121
    %v158 = vunpack.c.l.b16 %v122
    %v159 = vunpack.c.l.b16 %v123
    %v160 = vunpack.c.l.b16 %v124
    %v161 = vpack.c.b16 %v146, %v145
    %v162 = vpack.c.b16 %v148, %v147
    %v163 = vpack.c.b16 %v150, %v149
    %v164 = vpack.c.b16 %v152, %v151
    %v165 = vpack.c.b16 %v154, %v153
    %v166 = vpack.c.b16 %v156, %v155
    %v167 = vpack.c.b16 %v158, %v157
    %v168 = vpack.c.b16 %v160, %v159
    %177 = vmatpush.bf16.msra.mxu0 %v168
    %178 = vmatpush.bf16.msra.mxu0 %v167
    %179 = vmatpush.bf16.msra.mxu0 %v166
    %180 = vmatpush.bf16.msra.mxu0 %v165
    %181 = vmatpush.bf16.msra.mxu0 %v164
    %182 = vmatpush.bf16.msra.mxu0 %v163
    %183 = vmatpush.bf16.msra.mxu0 %v162
    %184 = vmatpush.bf16.msra.mxu0 %v161
    %185 = vmatmul.bf16.gmra.mxu0 %v107
    %v186 = vpop.f32.mrf.mxu0
    %v187 = vadd.f32 %v127, %v186
    %v188 = vpop.f32.mrf.mxu0
    %v189 = vadd.f32 %v127, %v188
    %190 = vmatmul.bf16.gmra.mxu0 %v108
    %v191 = vpop.f32.mrf.mxu0
    %v192 = vadd.f32 %v127, %v191
    %v193 = vpop.f32.mrf.mxu0
    %v194 = vadd.f32 %v127, %v193
    %195 = vdwg.mxu0
    %v196 = vmax.f32 %v187, 0.0
    %v197 = vmax.f32 %v189, 0.0
    %v198 = vmax.f32 %v192, 0.0
    %v199 = vmax.f32 %v194, 0.0
    %v200 = vpack.c.bf16 %v196, %v196
    %v201 = vpack.c.bf16 %v197, %v197
    %v202 = vpack.c.bf16 %v198, %v198
    %v203 = vpack.c.bf16 %v199, %v199
    %v208 = vunpack.c.l.b16 %v200
    %v209 = vunpack.c.l.b16 %v201
    %v210 = vunpack.c.l.b16 %v202
    %v211 = vunpack.c.l.b16 %v203
    %v212 = vpack.c.b16 %v209, %v208
    %v213 = vpack.c.b16 %v211, %v210
    %vm214 = vsmask.f32 7424
    %v216 = vshrl.u32 %v212, 16
    %v218 = vshll.u32 %v212, 16
    %v220 = vrot.slane %v218, 1
    %v221 = vor.u32 %v216, %v220
    %v223 = vshll.u32 %v213, 16
    %v225 = vrot.slane %v223, 1
    %v226 = vsel %vm214, %v221, %v225
    %v227 = vshrl.u32 %v213, 16
    %v229 = vor.u32 %v227, %v225
    %vm232 = vcmask 1047552
    %vm233 = vmand %vm232, %vm214
    %v234 = vsel %vm233, %v229, 0
    %vm235 = vcmask 1046528
    %v236 = vrot.slane %v212, 1
    %v237 = vrot.slane %v213, 1
    %v238 = vsel %vm235, %v236, %v237
    %vm240 = vcmask 1046528
    %v243 = vsel %vm240, %v237, 0
    %v247 = vld [vmem:[#allocation7] sm:$0xf]
    %v248 = vld [vmem:[#allocation7 + $0x4] sm:$0xf]
    %v249 = vld [vmem:[#allocation7 + $0x8] sm:$0xf]
    %v250 = vld [vmem:[#allocation7 + $0xc] sm:$0xf]
    %v251 = vld [vmem:[#allocation7 + $0x10] sm:$0xf]
    %v252 = vld [vmem:[#allocation7 + $0x14] sm:$0xf]
    %v253 = vld [vmem:[#allocation7 + $0x18] sm:$0xf]
    %v254 = vld [vmem:[#allocation7 + $0x1c] sm:$0xf]
    %v255 = vld [vmem:[#allocation7 + $0x20] sm:$0xf]
    %v256 = vld [vmem:[#allocation7 + $0x24] sm:$0xf]
    %v257 = vld [vmem:[#allocation7 + $0x28] sm:$0xf]
    %v258 = vld [vmem:[#allocation7 + $0x2c] sm:$0xf]
    %v259 = vld [vmem:[#allocation7 + $0x30] sm:$0xf]
    %v260 = vld [vmem:[#allocation7 + $0x34] sm:$0xf]
    %v261 = vld [vmem:[#allocation7 + $0x38] sm:$0xf]
    %v262 = vld [vmem:[#allocation7 + $0x3c] sm:$0xf]
    %v263 = vld [vmem:[#allocation7 + $0x40] sm:$0xf]
    %v264 = vld [vmem:[#allocation7 + $0x44] sm:$0xf]
    %v265 = vld [vmem:[#allocation7 + $0x48] sm:$0xf]
    %v266 = vld [vmem:[#allocation7 + $0x4c] sm:$0xf]
    %v267 = vld [vmem:[#allocation7 + $0x50] sm:$0xf]
    %v268 = vld [vmem:[#allocation7 + $0x54] sm:$0xf]
    %v269 = vld [vmem:[#allocation7 + $0x58] sm:$0xf]
    %v270 = vld [vmem:[#allocation7 + $0x5c] sm:$0xf]
    %v271 = vld [vmem:[#allocation7 + $0x60] sm:$0xf]
    %v272 = vld [vmem:[#allocation7 + $0x64] sm:$0xf]
    %v273 = vld [vmem:[#allocation7 + $0x68] sm:$0xf]
    %v274 = vld [vmem:[#allocation7 + $0x6c] sm:$0xf]
    %v275 = vld [vmem:[#allocation7 + $0x70] sm:$0xf]
    %v276 = vld [vmem:[#allocation7 + $0x74] sm:$0xf]
    %v277 = vld [vmem:[#allocation7 + $0x78] sm:$0xf]
    %v278 = vld [vmem:[#allocation7 + $0x7c] sm:$0xf]
    %v279 = vld [vmem:[#allocation7 + $0x80] sm:$0xf]
    %v280 = vld [vmem:[#allocation7 + $0x84] sm:$0xf]
    %v281 = vld [vmem:[#allocation7 + $0x88] sm:$0xf]
    %v282 = vld [vmem:[#allocation7 + $0x8c] sm:$0xf]
    %v283 = vld [vmem:[#allocation7 + $0x90] sm:$0xf]
    %v284 = vld [vmem:[#allocation7 + $0x94] sm:$0xf]
    %v285 = vld [vmem:[#allocation7 + $0x98] sm:$0xf]
    %v286 = vld [vmem:[#allocation7 + $0x9c] sm:$0xf]
    %v287 = vld [vmem:[#allocation7 + $0xa0] sm:$0xf]
    %v288 = vld [vmem:[#allocation7 + $0xa4] sm:$0xf]
    %v289 = vld [vmem:[#allocation7 + $0xa8] sm:$0xf]
    %v290 = vld [vmem:[#allocation7 + $0xac] sm:$0xf]
    %v291 = vld [vmem:[#allocation7 + $0xb0] sm:$0xf]
    %v292 = vld [vmem:[#allocation7 + $0xb4] sm:$0xf]
    %v293 = vld [vmem:[#allocation7 + $0xb8] sm:$0xf]
    %v294 = vld [vmem:[#allocation7 + $0xbc] sm:$0xf]
    %v343 = vunpack.c.l.b16 %v247
    %v344 = vunpack.c.l.b16 %v248
    %v345 = vunpack.c.l.b16 %v249
    %v346 = vunpack.c.l.b16 %v250
    %v347 = vunpack.c.l.b16 %v251
    %v348 = vunpack.c.l.b16 %v252
    %v349 = vunpack.c.l.b16 %v253
    %v350 = vunpack.c.l.b16 %v254
    %v351 = vunpack.c.l.b16 %v255
    %v352 = vunpack.c.l.b16 %v256
    %v353 = vunpack.c.l.b16 %v257
    %v354 = vunpack.c.l.b16 %v258
    %v355 = vunpack.c.l.b16 %v259
    %v356 = vunpack.c.l.b16 %v260
    %v357 = vunpack.c.l.b16 %v261
    %v358 = vunpack.c.l.b16 %v262
    %v359 = vunpack.c.l.b16 %v263
    %v360 = vunpack.c.l.b16 %v264
    %v361 = vunpack.c.l.b16 %v265
    %v362 = vunpack.c.l.b16 %v266
    %v363 = vunpack.c.l.b16 %v267
    %v364 = vunpack.c.l.b16 %v268
    %v365 = vunpack.c.l.b16 %v269
    %v366 = vunpack.c.l.b16 %v270
    %v367 = vunpack.c.l.b16 %v271
    %v368 = vunpack.c.l.b16 %v272
    %v369 = vunpack.c.l.b16 %v273
    %v370 = vunpack.c.l.b16 %v274
    %v371 = vunpack.c.l.b16 %v275
    %v372 = vunpack.c.l.b16 %v276
    %v373 = vunpack.c.l.b16 %v277
    %v374 = vunpack.c.l.b16 %v278
    %v375 = vunpack.c.l.b16 %v279
    %v376 = vunpack.c.l.b16 %v280
    %v377 = vunpack.c.l.b16 %v281
    %v378 = vunpack.c.l.b16 %v282
    %v379 = vunpack.c.l.b16 %v283
    %v380 = vunpack.c.l.b16 %v284
    %v381 = vunpack.c.l.b16 %v285
    %v382 = vunpack.c.l.b16 %v286
    %v383 = vunpack.c.l.b16 %v287
    %v384 = vunpack.c.l.b16 %v288
    %v385 = vunpack.c.l.b16 %v289
    %v386 = vunpack.c.l.b16 %v290
    %v387 = vunpack.c.l.b16 %v291
    %v388 = vunpack.c.l.b16 %v292
    %v389 = vunpack.c.l.b16 %v293
    %v390 = vunpack.c.l.b16 %v294
    %v391 = vpack.c.b16 %v344, %v343
    %v392 = vpack.c.b16 %v346, %v345
    %v393 = vpack.c.b16 %v348, %v347
    %v394 = vpack.c.b16 %v350, %v349
    %v395 = vpack.c.b16 %v352, %v351
    %v396 = vpack.c.b16 %v354, %v353
    %v397 = vpack.c.b16 %v356, %v355
    %v398 = vpack.c.b16 %v358, %v357
    %v399 = vpack.c.b16 %v360, %v359
    %v400 = vpack.c.b16 %v362, %v361
    %v401 = vpack.c.b16 %v364, %v363
    %v402 = vpack.c.b16 %v366, %v365
    %v403 = vpack.c.b16 %v368, %v367
    %v404 = vpack.c.b16 %v370, %v369
    %v405 = vpack.c.b16 %v372, %v371
    %v406 = vpack.c.b16 %v374, %v373
    %v407 = vpack.c.b16 %v376, %v375
    %v408 = vpack.c.b16 %v378, %v377
    %v409 = vpack.c.b16 %v380, %v379
    %v410 = vpack.c.b16 %v382, %v381
    %v411 = vpack.c.b16 %v384, %v383
    %v412 = vpack.c.b16 %v386, %v385
    %v413 = vpack.c.b16 %v388, %v387
    %v414 = vpack.c.b16 %v390, %v389
    %439 = vmatpush.bf16.msra.mxu0 %v398
    %440 = vmatpush.bf16.msra.mxu0 %v397
    %441 = vmatpush.bf16.msra.mxu0 %v396
    %442 = vmatpush.bf16.msra.mxu0 %v395
    %443 = vmatpush.bf16.msra.mxu0 %v394
    %444 = vmatpush.bf16.msra.mxu0 %v393
    %445 = vmatpush.bf16.msra.mxu0 %v392
    %446 = vmatpush.bf16.msra.mxu0 %v391
    %447 = vmatmul.bf16.gmra.mxu0 %v212
    %v448 = vpop.f32.mrf.mxu0
    %v449 = vadd.f32 0.0, %v448
    %v450 = vpop.f32.mrf.mxu0
    %v451 = vadd.f32 0.0, %v450
    %452 = vmatmul.bf16.gmra.mxu0 %v213
    %v453 = vpop.f32.mrf.mxu0
    %v454 = vadd.f32 0.0, %v453
    %v455 = vpop.f32.mrf.mxu0
    %v456 = vadd.f32 0.0, %v455
    %457 = vdwg.mxu0
    %458 = vmatpush.bf16.msra.mxu0 %v406
    %459 = vmatpush.bf16.msra.mxu0 %v405
    %460 = vmatpush.bf16.msra.mxu0 %v404
    %461 = vmatpush.bf16.msra.mxu0 %v403
    %462 = vmatpush.bf16.msra.mxu0 %v402
    %463 = vmatpush.bf16.msra.mxu0 %v401
    %464 = vmatpush.bf16.msra.mxu0 %v400
    %465 = vmatpush.bf16.msra.mxu0 %v399
    %466 = vmatmul.bf16.gmra.mxu0 %v226
    %v467 = vpop.f32.mrf.mxu0
    %v468 = vadd.f32 %v449, %v467
    %v469 = vpop.f32.mrf.mxu0
    %v470 = vadd.f32 %v451, %v469
    %471 = vmatmul.bf16.gmra.mxu0 %v234
    %v472 = vpop.f32.mrf.mxu0
    %v473 = vadd.f32 %v454, %v472
    %v474 = vpop.f32.mrf.mxu0
    %v475 = vadd.f32 %v456, %v474
    %476 = vdwg.mxu0
    %477 = vmatpush.bf16.msra.mxu0 %v414
    %478 = vmatpush.bf16.msra.mxu0 %v413
    %479 = vmatpush.bf16.msra.mxu0 %v412
    %480 = vmatpush.bf16.msra.mxu0 %v411
    %481 = vmatpush.bf16.msra.mxu0 %v410
    %482 = vmatpush.bf16.msra.mxu0 %v409
    %483 = vmatpush.bf16.msra.mxu0 %v408
    %484 = vmatpush.bf16.msra.mxu0 %v407
    %485 = vmatmul.bf16.gmra.mxu0 %v238
    %v486 = vpop.f32.mrf.mxu0
    %v487 = vadd.f32 %v468, %v486
    %v488 = vpop.f32.mrf.mxu0
    %v489 = vadd.f32 %v470, %v488
    %490 = vmatmul.bf16.gmra.mxu0 %v243
    %v491 = vpop.f32.mrf.mxu0
    %v492 = vadd.f32 %v473, %v491
    %v493 = vpop.f32.mrf.mxu0
    %v494 = vadd.f32 %v475, %v493
    %495 = vdwg.mxu0
    %v496 = vmax.f32 %v487, 0.0
    %v497 = vmax.f32 %v489, 0.0
    %v498 = vmax.f32 %v492, 0.0
    %v499 = vmax.f32 %v494, 0.0
    %vm500 = vcmask 1045504
    %v501 = vsel %vm500, %v497, 0.0
    %v502 = vadd.f32 %v496, %v501
    %v503 = vrot.slane %v502, 4
    %v504 = vadd.f32 %v502, %v503
    %v505 = vrot.slane %v504, 2
    %v506 = vadd.f32 %v504, %v505
    %v507 = vrot.slane %v506, 1
    %v508 = vadd.f32 %v506, %v507
    %v509 = vsel %vm500, %v499, 0.0
    %v510 = vadd.f32 %v498, %v509
    %v511 = vrot.slane %v510, 4
    %v512 = vadd.f32 %v510, %v511
    %v513 = vrot.slane %v512, 2
    %v514 = vadd.f32 %v512, %v513
    %v515 = vrot.slane %v514, 1
    %v516 = vadd.f32 %v514, %v515
    %v517 = vmul.f32 %v508, 0.071428575
    %v518 = vmul.f32 %v516, 0.071428575
    %v519 = vld [vmem:[%s4] sm:$0x1]
    %v520 = vld [vmem:[%s4 + $0x1] sm:$0x1]
    %v521 = vld [vmem:[%s4 + $0x2] sm:$0x1]
    %524 = vrot.lane.b32.xlu0 %v517, 1
    %v525 = vpop.permute.xlu0 %524
    %526 = vrot.lane.b32.xlu0 %v518, 1
    %v527 = vpop.permute.xlu0 %526
    %vm530 = vcmask 7168
    %v531 = vsel %vm530, 0.0, %v525
    %v532 = vsel %vm530, 0.0, %v527
    %v533 = vmul.f32 %v531, %v519
    %v534 = vmul.f32 %v532, %v519
    %v535 = vadd.f32 %v533, 0.0
    %v536 = vadd.f32 %v534, 0.0
    %v537 = vmul.f32 %v517, %v520
    %v538 = vmul.f32 %v518, %v520
    %v539 = vadd.f32 %v535, %v537
    %v540 = vadd.f32 %v536, %v538
    %541 = vrot.lane.b32.xlu0 %v517, 127
    %v542 = vpop.permute.xlu0 %541
    %543 = vrot.lane.b32.xlu0 %v518, 127
    %v544 = vpop.permute.xlu0 %543
    %vm547 = vcmask 1039360
    %v548 = vsel %vm547, %v542, 0.0
    %v549 = vsel %vm547, %v544, 0.0
    %v550 = vmul.f32 %v548, %v521
    %v551 = vmul.f32 %v549, %v521
    %v552 = vadd.f32 %v539, %v550
    %v553 = vadd.f32 %v540, %v551
    %v554 = vxor.u32 %v552, 2147483648
    %v555 = vxor.u32 %v553, 2147483648
    %v556 = vmul.f32 %v554, 1.442695
    %v557 = vpow.pop %v556
    %v558 = vmul.f32 %v555, 1.442695
    %v559 = vpow.pop %v558
    %v560 = vadd.f32 %v557, 1.0
    %v561 = vadd.f32 %v559, 1.0
    %v562 = vrcp.pop %v560
    %v563 = vmul.f32 %v560, %v562
    %v564 = vsub.f32 1.0, %v563
    %v565 = vmul.f32 %v562, %v564
    %v566 = vadd.f32 %v562, %v565
    %vm567 = vweird.f32 %v560
    %vm568 = vweird.f32 %v562
    %vm569 = vmor %vm567, %vm568
    %v570 = vsel %vm569, %v562, %v566
    %v571 = vand.u32 2147483647, %v560
    %vm572 = vcmp.eq.f32.partialorder %v571, 8.507059e+37
    %v573 = vand.u32 %v560, 2147483648
    %v574 = vor.u32 1.1754944e-38, %v573
    %v575 = vsel %vm572, %v574, %v570
    %v576 = vmul.f32 1.0, %v575
    %v577 = vrcp.pop %v561
    %v578 = vmul.f32 %v561, %v577
    %v579 = vsub.f32 1.0, %v578
    %v580 = vmul.f32 %v577, %v579
    %v581 = vadd.f32 %v577, %v580
    %vm582 = vweird.f32 %v561
    %vm583 = vweird.f32 %v577
    %vm584 = vmor %vm582, %vm583
    %v585 = vsel %vm584, %v577, %v581
    %v586 = vand.u32 2147483647, %v561
    %vm587 = vcmp.eq.f32.partialorder %v586, 8.507059e+37
    %v588 = vand.u32 %v561, 2147483648
    %v589 = vor.u32 1.1754944e-38, %v588
    %v590 = vsel %vm587, %v589, %v585
    %v591 = vmul.f32 1.0, %v590
    %v592 = vperm.slane %v576, 0
    %v593 = vperm.slane %v591, 0
    %v594 = vmul.f32 %v496, %v592
    %v595 = vmul.f32 %v497, %v592
    %v596 = vmul.f32 %v498, %v593
    %v597 = vmul.f32 %v499, %v593
    %v598 = vpack.c.bf16 %v594, %v594
    %v599 = vpack.c.bf16 %v595, %v595
    %v600 = vpack.c.bf16 %v596, %v596
    %v601 = vpack.c.bf16 %v597, %v597
    %v602 = vld [vmem:[#allocation9] sm:$0xf]
    %v603 = vld [vmem:[#allocation9 + $0x4] sm:$0xf]
    %v604 = vld [vmem:[#allocation9 + $0x8] sm:$0xf]
    %v605 = vld [vmem:[#allocation9 + $0xc] sm:$0xf]
    %v606 = vld [vmem:[#allocation9 + $0x10] sm:$0xf]
    %v607 = vld [vmem:[#allocation9 + $0x14] sm:$0xf]
    %v608 = vld [vmem:[#allocation9 + $0x18] sm:$0xf]
    %v609 = vld [vmem:[#allocation9 + $0x1c] sm:$0xf]
    %v610 = vld [vmem:[#allocation9 + $0x20] sm:$0xf]
    %v611 = vld [vmem:[#allocation9 + $0x24] sm:$0xf]
    %v612 = vld [vmem:[#allocation9 + $0x28] sm:$0xf]
    %v613 = vld [vmem:[#allocation9 + $0x2c] sm:$0xf]
    %v614 = vld [vmem:[#allocation9 + $0x30] sm:$0xf]
    %v615 = vld [vmem:[#allocation9 + $0x34] sm:$0xf]
    %v616 = vld [vmem:[#allocation9 + $0x38] sm:$0xf]
    %v617 = vld [vmem:[#allocation9 + $0x3c] sm:$0xf]
    %v618 = vld [vmem:[%s6] sm:$0x1]
    %v620 = vperm.slane %v618, 0
    %v626 = vunpack.c.l.b16 %v598
    %v627 = vunpack.c.l.b16 %v599
    %v628 = vunpack.c.l.b16 %v600
    %v629 = vunpack.c.l.b16 %v601
    %v630 = vpack.c.b16 %v627, %v626
    %v631 = vpack.c.b16 %v629, %v628
    %v650 = vunpack.c.l.b16 %v602
    %v651 = vunpack.c.l.b16 %v603
    %v652 = vunpack.c.l.b16 %v604
    %v653 = vunpack.c.l.b16 %v605
    %v654 = vunpack.c.l.b16 %v606
    %v655 = vunpack.c.l.b16 %v607
    %v656 = vunpack.c.l.b16 %v608
    %v657 = vunpack.c.l.b16 %v609
    %v658 = vunpack.c.l.b16 %v610
    %v659 = vunpack.c.l.b16 %v611
    %v660 = vunpack.c.l.b16 %v612
    %v661 = vunpack.c.l.b16 %v613
    %v662 = vunpack.c.l.b16 %v614
    %v663 = vunpack.c.l.b16 %v615
    %v664 = vunpack.c.l.b16 %v616
    %v665 = vunpack.c.l.b16 %v617
    %v666 = vpack.c.b16 %v651, %v650
    %v667 = vpack.c.b16 %v653, %v652
    %v668 = vpack.c.b16 %v655, %v654
    %v669 = vpack.c.b16 %v657, %v656
    %v670 = vpack.c.b16 %v659, %v658
    %v671 = vpack.c.b16 %v661, %v660
    %v672 = vpack.c.b16 %v663, %v662
    %v673 = vpack.c.b16 %v665, %v664
    %682 = vmatpush.bf16.msra.mxu0 %v673
    %683 = vmatpush.bf16.msra.mxu0 %v672
    %684 = vmatpush.bf16.msra.mxu0 %v671
    %685 = vmatpush.bf16.msra.mxu0 %v670
    %686 = vmatpush.bf16.msra.mxu0 %v669
    %687 = vmatpush.bf16.msra.mxu0 %v668
    %688 = vmatpush.bf16.msra.mxu0 %v667
    %689 = vmatpush.bf16.msra.mxu0 %v666
    %690 = vmatmul.bf16.gmra.mxu0 %v630
    %v691 = vpop.f32.mrf.mxu0
    %v692 = vadd.f32 %v620, %v691
    %v693 = vpop.f32.mrf.mxu0
    %v694 = vadd.f32 %v620, %v693
    %695 = vmatmul.bf16.gmra.mxu0 %v631
    %v696 = vpop.f32.mrf.mxu0
    %v697 = vadd.f32 %v620, %v696
    %v698 = vpop.f32.mrf.mxu0
    %v699 = vadd.f32 %v620, %v698
    %700 = vdwg.mxu0
    %701 = vst [vmem:[%s7] sm:$0xff] %v692
    %702 = vst [vmem:[%s7 + $0x8] sm:$0x3f] %v694
    %703 = vst [vmem:[%s7 + $0x10] sm:$0xff] %v697
    %704 = vst [vmem:[%s7 + $0x18] sm:$0x3f] %v699
    // Predicated region
    $region50: #{tpu_custom_call.1} parent=1 // pred_check
      _
    $region51: #{tpu_custom_call.1} parent=1 // pred_check_branch
      %706 = sbr.rel (0) target = $region53
    $region52: #{tpu_custom_call.1} parent=1 // pred_region
      _
    $region53: #{tpu_custom_call.1} parent=1 // pred_fallthru
      _
    // Predicated region
    $region54: #{tpu_custom_call.1} parent=1 // pred_check
      _
    $region55: #{tpu_custom_call.1} parent=1 // pred_check_branch
      %708 = sbr.rel (0) target = $region57
    $region56: #{tpu_custom_call.1} parent=1 // pred_region
      _
    $region57: #{tpu_custom_call.1} parent=1 // pred_fallthru
      _
    %709 = vsyncpa [#allocation3], 1
    %710 = vsyncpa [#allocation5], 1
    %711 = vsyncpa [#allocation8], 1

</llo_original>
